<compile_context>
chip_gen: v5e
topology: v5e:2x2
jax: 0.10.0
libtpu: 0.0.40
codegen_flags: <defaults>
</compile_context>

<pallas_src>
import functools

import jax
import jax.numpy as jnp
import numpy as np
from jax.experimental import pallas as pl
from jax.experimental.pallas import tpu as pltpu


def _joints_l2_kernel(valid_ref, pred_ref, gt_ref, out_ref, acc_ref, *, thresh1):
    r = pl.program_id(1)

    @pl.when(r == 0)
    def _():
        acc_ref[...] = jnp.zeros_like(acc_ref)

    # weight = (valid > t1), applied to the label only (as in PyTorch).
    w = (valid_ref[...] > thresh1).astype(jnp.float32)          # (TM, 1)
    pred = pred_ref[...].astype(jnp.float32)                    # (TM, HW)
    gt = gt_ref[...].astype(jnp.float32) * w                    # broadcast over HW
    diff = pred - gt
    sq = diff * diff                                            # (TM, HW)

    # Fold TM rows into sublane groups of 8 and add them elementwise into the
    # (8, HW) accumulator: pure VPU adds, no cross-lane reduction per step.
    tm = sq.shape[0]
    acc_ref[...] += jnp.sum(sq.reshape(tm // 8, 8, sq.shape[1]), axis=0)

    @pl.when(r == pl.num_programs(1) - 1)
    def _():
        out_ref[0] = acc_ref[...]


def _sublane_multiple(dtype):
    size = jnp.dtype(dtype).itemsize
    return {4: 8, 2: 16, 1: 32}.get(size, 8)


def _choose_tiling(rows, hw, sub):
    """Pick (num_cores, steps_per_core, tm, padded_rows)."""
    # ~2 MiB per (TM, HW) f32 block -> 2 inputs x 2 buffers stays < ~10 MiB VMEM.
    bytes_per_row = 4 * hw
    cap = (2 << 20) // max(1, bytes_per_row)
    cap = max(sub, min(1024, (cap // sub) * sub))
    nc = 2 if rows >= 2 * sub else 1                 # split over 2 TCs (v7x)
    steps = max(1, -(-rows // (nc * cap)))           # ceil
    tm = -(-rows // (nc * steps))                    # ceil
    tm = -(-tm // sub) * sub                         # round up to sublane mult
    padded = nc * steps * tm
    return nc, steps, tm, padded


def joints_l2_loss(output, valid, label, *, thresh1=1.0):
    """has_ohkm=False forward of JointsL2Loss."""
    assert output.shape == label.shape
    B, K, H, W = output.shape
    HW = H * W
    rows = B * K

    pred = output.reshape(rows, HW)                       # keep original dtype
    gt = label.reshape(rows, HW)                          # keep original dtype
    val = valid.reshape(rows, 1).astype(jnp.float32)      # tiny (B*K floats)

    sub = max(_sublane_multiple(output.dtype), _sublane_multiple(label.dtype))
    nc, steps, tm, padded = _choose_tiling(rows, HW, sub)

    if padded != rows:
        pad = padded - rows
        # zero-padded rows contribute exactly 0 to the sum of squares
        pred = jnp.pad(pred, ((0, pad), (0, 0)))
        gt = jnp.pad(gt, ((0, pad), (0, 0)))
        val = jnp.pad(val, ((0, pad), (0, 0)))

    kernel = functools.partial(_joints_l2_kernel, thresh1=float(thresh1))

    partials = pl.pallas_call(
        kernel,
        out_shape=jax.ShapeDtypeStruct((nc, 8, HW), jnp.float32),
        grid_spec=pltpu.PrefetchScalarGridSpec(
            num_scalar_prefetch=0,
            grid=(nc, steps),
            in_specs=[
                pl.BlockSpec((tm, 1), lambda c, r: (c * steps + r, 0)),    # valid
                pl.BlockSpec((tm, HW), lambda c, r: (c * steps + r, 0)),   # pred
                pl.BlockSpec((tm, HW), lambda c, r: (c * steps + r, 0)),   # label
            ],
            out_specs=pl.BlockSpec((1, 8, HW), lambda c, r: (c, 0, 0)),
            scratch_shapes=[pltpu.VMEM((8, HW), jnp.float32)],
        ),
        compiler_params=pltpu.CompilerParams(
            dimension_semantics=("parallel", "arbitrary"),
            vmem_limit_bytes=64 << 20),
    )(val, pred, gt)

    denom = float(rows * HW)  # (1/B) * per-sample mean over K*HW == global mean
    return jnp.sum(partials) / denom


def _reference(output, valid, label, thresh1=1.0):
    B, K, H, W = output.shape
    pred = output.reshape(B, K, H * W).astype(jnp.float32)
    gt = label.reshape(B, K, H * W).astype(jnp.float32)
    w = (valid.reshape(B, K, 1) > thresh1).astype(jnp.float32)
    gt = gt * w
    per_sample = jnp.mean((pred - gt) ** 2, axis=(1, 2))
    return jnp.mean(per_sample)


if __name__ == "__main__":
    key = jax.random.PRNGKey(0)
    k1, k2, k3 = jax.random.split(key, 3)

    B, K, H, W = 2, 4, 16, 16
    output = jax.random.normal(k1, (B, K, H, W), dtype=jnp.float32)
    label = jax.random.normal(k2, (B, K, H, W), dtype=jnp.float32)
    # visibility flags in {0, 1, 2}, as in MSPN; weight is (valid > 1)
    valid = jax.random.randint(k3, (B, K, 1), 0, 3).astype(jnp.float32)

    loss = joints_l2_loss(output, valid, label)
    loss = jax.block_until_ready(loss)

    ref = _reference(output, valid, label)
    np.testing.assert_allclose(np.asarray(loss), np.asarray(ref),
                               rtol=1e-5, atol=1e-6)
    print("KERNEL_OK")
</pallas_src>

<mosaic_0001>
module attributes {stable_mosaic.version = 11 : i64} {
  func.func @_joints_l2_kernel(%arg0: i32, %arg1: i32, %arg2: memref<8x1xf32, #tpu.memory_space<vmem>>, %arg3: memref<8x256xf32, #tpu.memory_space<vmem>>, %arg4: memref<8x256xf32, #tpu.memory_space<vmem>>, %arg5: memref<1x8x256xf32, #tpu.memory_space<vmem>>, %arg6: memref<8x256xf32, #tpu.memory_space<vmem>>) attributes {dimension_semantics = [#tpu.dimension_semantics<parallel>, #tpu.dimension_semantics<arbitrary>], iteration_bounds = array<i64: 1, 1>, scalar_prefetch = 0 : i64, scratch_operands = 1 : i64, tpu.core_type = #tpu.core_type<tc>, window_params = [{transform_indices = @transform_0, window_bounds = array<i64: 8, 1>}, {transform_indices = @transform_1, window_bounds = array<i64: 8, 256>}, {transform_indices = @transform_2, window_bounds = array<i64: 8, 256>}, {transform_indices = @transform_3, window_bounds = array<i64: 1, 8, 256>}]} {
    %c0_i32 = arith.constant 0 : i32
    %0 = arith.cmpi eq, %arg1, %c0_i32 : i32
    %1 = arith.extui %0 : i1 to i32
    %c0_i32_0 = arith.constant 0 : i32
    %2 = arith.cmpi ne, %1, %c0_i32_0 : i32
    scf.if %2 {
      %cst_13 = arith.constant 0.000000e+00 : f32
      %22 = vector.broadcast %cst_13 : f32 to vector<8x256xf32>
      %c0_14 = arith.constant 0 : index
      %c0_15 = arith.constant 0 : index
      %23 = vector.load %arg6[%c0_14, %c0_15] : memref<8x256xf32, #tpu.memory_space<vmem>>, vector<8x256xf32>
      tpu.vector_store %arg6[%c0_14, %c0_15], %22 {strides = array<i32>} : memref<8x256xf32, #tpu.memory_space<vmem>>, vector<8x256xf32>,
    } else {
    }
    %c0 = arith.constant 0 : index
    %c0_1 = arith.constant 0 : index
    %3 = vector.load %arg2[%c0, %c0_1] : memref<8x1xf32, #tpu.memory_space<vmem>>, vector<8x1xf32>
    %cst = arith.constant 1.000000e+00 : f32
    %4 = vector.broadcast %cst : f32 to vector<8x1xf32>
    %5 = arith.cmpf ogt, %3, %4 : vector<8x1xf32>
    %6 = arith.extui %5 : vector<8x1xi1> to vector<8x1xi32>
    %7 = arith.sitofp %6 : vector<8x1xi32> to vector<8x1xf32>
    %c0_2 = arith.constant 0 : index
    %c0_3 = arith.constant 0 : index
    %8 = vector.load %arg3[%c0_2, %c0_3] : memref<8x256xf32, #tpu.memory_space<vmem>>, vector<8x256xf32>
    %c0_4 = arith.constant 0 : index
    %c0_5 = arith.constant 0 : index
    %9 = vector.load %arg4[%c0_4, %c0_5] : memref<8x256xf32, #tpu.memory_space<vmem>>, vector<8x256xf32>
    %10 = vector.broadcast %7 : vector<8x1xf32> to vector<8x256xf32>
    %11 = arith.mulf %9, %10 : vector<8x256xf32>
    %12 = arith.subf %8, %11 : vector<8x256xf32>
    %13 = arith.mulf %12, %12 : vector<8x256xf32>
    %c0_6 = arith.constant 0 : index
    %c0_7 = arith.constant 0 : index
    %14 = vector.load %arg6[%c0_6, %c0_7] : memref<8x256xf32, #tpu.memory_space<vmem>>, vector<8x256xf32>
    %15 = vector.shape_cast %13 : vector<8x256xf32> to vector<1x8x256xf32>
    %cst_8 = arith.constant dense<0.000000e+00> : vector<8x256xf32>
    %16 = vector.multi_reduction <add>, %15, %cst_8 [0] : vector<1x8x256xf32> to vector<8x256xf32>
    %17 = arith.addf %14, %16 : vector<8x256xf32>
    %c0_9 = arith.constant 0 : index
    %c0_10 = arith.constant 0 : index
    %18 = vector.load %arg6[%c0_9, %c0_10] : memref<8x256xf32, #tpu.memory_space<vmem>>, vector<8x256xf32>
    tpu.vector_store %arg6[%c0_9, %c0_10], %17 {strides = array<i32>} : memref<8x256xf32, #tpu.memory_space<vmem>>, vector<8x256xf32>,
    %c0_i32_11 = arith.constant 0 : i32
    %19 = arith.cmpi eq, %arg1, %c0_i32_11 : i32
    %20 = arith.extui %19 : i1 to i32
    %c0_i32_12 = arith.constant 0 : i32
    %21 = arith.cmpi ne, %20, %c0_i32_12 : i32
    scf.if %21 {
      %c0_13 = arith.constant 0 : index
      %c0_14 = arith.constant 0 : index
      %22 = vector.load %arg6[%c0_13, %c0_14] : memref<8x256xf32, #tpu.memory_space<vmem>>, vector<8x256xf32>
      %c0_15 = arith.constant 0 : index
      %c0_16 = arith.constant 0 : index
      %c0_17 = arith.constant 0 : index
      %23 = vector.load %arg5[%c0_15, %c0_16, %c0_17] : memref<1x8x256xf32, #tpu.memory_space<vmem>>, vector<1x8x256xf32>
      %24 = vector.shape_cast %23 : vector<1x8x256xf32> to vector<8x256xf32>
      %25 = vector.shape_cast %22 : vector<8x256xf32> to vector<1x8x256xf32>
      tpu.vector_store %arg5[%c0_15, %c0_16, %c0_17], %25 {strides = array<i32>} : memref<1x8x256xf32, #tpu.memory_space<vmem>>, vector<1x8x256xf32>,
    } else {
    }
    return
  }
  func.func @transform_0(%arg0: i32, %arg1: i32) -> (i32, i32) {
    %c1_i32 = arith.constant 1 : i32
    %0 = arith.muli %arg0, %c1_i32 : i32
    %1 = arith.addi %0, %arg1 : i32
    %c0_i32 = arith.constant 0 : i32
    %c0_i32_0 = arith.constant 0 : i32
    return %1, %c0_i32 : i32, i32
  }
  func.func @transform_1(%arg0: i32, %arg1: i32) -> (i32, i32) {
    %c1_i32 = arith.constant 1 : i32
    %0 = arith.muli %arg0, %c1_i32 : i32
    %1 = arith.addi %0, %arg1 : i32
    %c0_i32 = arith.constant 0 : i32
    %c0_i32_0 = arith.constant 0 : i32
    return %1, %c0_i32 : i32, i32
  }
  func.func @transform_2(%arg0: i32, %arg1: i32) -> (i32, i32) {
    %c1_i32 = arith.constant 1 : i32
    %0 = arith.muli %arg0, %c1_i32 : i32
    %1 = arith.addi %0, %arg1 : i32
    %c0_i32 = arith.constant 0 : i32
    %c0_i32_0 = arith.constant 0 : i32
    return %1, %c0_i32 : i32, i32
  }
  func.func @transform_3(%arg0: i32, %arg1: i32) -> (i32, i32, i32) {
    %c0_i32 = arith.constant 0 : i32
    %c0_i32_0 = arith.constant 0 : i32
    %c0_i32_1 = arith.constant 0 : i32
    return %arg0, %c0_i32, %c0_i32_0 : i32, i32, i32
  }
}

</mosaic_0001>

<llo_original>
// kernel: tpu_custom_call.1
$region0: #{tpu_custom_call.1}
  #allocation0 [shape = 'u32[]', space=smem, size = 0x4, offset = 0x4, fixed_abs, tag = 'smem constant byte address 0x4 - core index']
  #allocation1 [shape = 'u32[72,128]{1,0:T(1,128)}', space=vmem, size = 0x9000, scoped, tag = 'internal scratch']
  #allocation2 [shape = 'f32[8,256]{1,0:T(8,128)}', space=vmem, size = 0x2000, scoped, tag = 'scratch operand']
  %s0 = inlined_call_operand.vmem [shape: f32[8,1], index: 0, kind: input, shape index: {}]
  %s1 = inlined_call_operand.hbm [shape: f32[8,256], index: 1, kind: input, shape index: {}]
  %s2 = inlined_call_operand.hbm [shape: f32[8,256], index: 2, kind: input, shape index: {}]
  %s3 = inlined_call_operand.hbm [shape: f32[1,8,256], index: 3, kind: output, shape index: {}]
  %s4 = sld [smem:[#allocation0]]
  $region38: #{tpu_custom_call.1} parent=0
    _
  %s6 = ssub.s32 1, %s4
  %s7 = scalar_select 0, %s6, %s4
  $region1: #{tpu_custom_call.1} parent=0
    #allocation3 [shape = 'u8[8192]{0}', space=vmem, size = 0x2000, scoped, tag = 'input window, operand 1, single buffered']
    #allocation4 [shape = 's32[1]{0}', space=sflag, size = 0x4, scoped, tag = 'scoped memory for tpu_custom_call.1']
    #allocation5 [shape = 's32[1]{0}', space=sflag, size = 0x4, scoped, tag = 'scoped memory for tpu_custom_call.1']
    #allocation6 [shape = 'u8[8192]{0}', space=vmem, size = 0x2000, scoped, tag = 'input window, operand 2, single buffered']
    #allocation7 [shape = 's32[1]{0}', space=sflag, size = 0x4, scoped, tag = 'scoped memory for tpu_custom_call.1']
    #allocation8 [shape = 'u8[8192]{0}', space=vmem, size = 0x2000, scoped, tag = 'output window, operand 0, single buffered']
    %8 = vsyncpa [#allocation4], 0
    %9 = vsyncpa [#allocation7], 0
    %10 = vsyncpa [#allocation5], 0
    // Predicated region
    $region2: #{tpu_custom_call.1} parent=1 // pred_check
      _
    $region3: #{tpu_custom_call.1} parent=1 // pred_check_branch
      %12 = sbr.rel (0) target = $region5
    $region4: #{tpu_custom_call.1} parent=1 // pred_region
      %s13 = sadd.s32 0, 0
      %p14 = scmp.lt.s32.totalorder %s13, 0
      %s15 = scalar_select %p14, %s13, 0
      %s16 = smul.addr %s15, 8
      %s17 = scalar_lea.vmem %s0, %s16
      %s18 = sadd.s32 0, 0
    $region5: #{tpu_custom_call.1} parent=1 // pred_fallthru
      _
    // Predicated region
    $region6: #{tpu_custom_call.1} parent=1 // pred_check
      _
    $region7: #{tpu_custom_call.1} parent=1 // pred_check_branch
      %20 = sbr.rel (0) target = $region9
    $region8: #{tpu_custom_call.1} parent=1 // pred_region
      %s21 = sadd.s32 0, 0
      %23 = vsyncadd [#allocation4], 0
      %s24 = smul.addr %s21, 2
      %s25 = smul.addr %s24, 8
      %s26 = scalar_lea.hbm %s1, %s25
      %s28 = sshll.u32 %s26, 4
      %s29 = int_to_ptr.hbm [resolvable:$true] %s28
      %s30 = sshll.u32 [#allocation3], 4
      %s31 = int_to_ptr.vmem [resolvable:$true] %s30
      %33 = dma.hbm_to_vmem [thread:$0]  %s29, 256, %s31, [#allocation4]
    $region9: #{tpu_custom_call.1} parent=1 // pred_fallthru
      _
    // Predicated region
    $region10: #{tpu_custom_call.1} parent=1 // pred_check
      _
    $region11: #{tpu_custom_call.1} parent=1 // pred_check_branch
      %35 = sbr.rel (0) target = $region13
    $region12: #{tpu_custom_call.1} parent=1 // pred_region
      %s36 = sadd.s32 0, 0
      %38 = vsyncadd [#allocation7], 0
      %s39 = smul.addr %s36, 2
      %s40 = smul.addr %s39, 8
      %s41 = scalar_lea.hbm %s2, %s40
      %s43 = sshll.u32 %s41, 4
      %s44 = int_to_ptr.hbm [resolvable:$true] %s43
      %s45 = sshll.u32 [#allocation6], 4
      %s46 = int_to_ptr.vmem [resolvable:$true] %s45
      %48 = dma.hbm_to_vmem [thread:$0]  %s44, 256, %s46, [#allocation7]
    $region13: #{tpu_custom_call.1} parent=1 // pred_fallthru
      _
    // Predicated region
    $region14: #{tpu_custom_call.1} parent=1 // pred_check
      _
    $region15: #{tpu_custom_call.1} parent=1 // pred_check_branch
      %50 = sbr.rel (0) target = $region17
    $region16: #{tpu_custom_call.1} parent=1 // pred_region
      %52 = dma.done [#allocation4], 256
    $region17: #{tpu_custom_call.1} parent=1 // pred_fallthru
      _
    // Predicated region
    $region18: #{tpu_custom_call.1} parent=1 // pred_check
      _
    $region19: #{tpu_custom_call.1} parent=1 // pred_check_branch
      %54 = sbr.rel (0) target = $region21
    $region20: #{tpu_custom_call.1} parent=1 // pred_region
      %56 = dma.done [#allocation7], 256
    $region21: #{tpu_custom_call.1} parent=1 // pred_fallthru
      _
    %s57 = sadd.s32 0, 0
    %p58 = scmp.lt.s32.totalorder %s57, 0
    %s59 = scalar_select %p58, %s57, 0
    %s60 = smul.addr %s59, 8
    %s61 = scalar_lea.vmem %s0, %s60
    %s62 = sadd.s32 0, 0
    %p63 = scmp.lt.s32.totalorder %s62, 0
    %s64 = scalar_select %p63, %s62, 0
    %s65 = smul.addr %s64, 8
    %s66 = scalar_lea.vmem %s0, %s65
    %s67 = sadd.s32 0, 0
    %s68 = sadd.s32 0, 0
    %s69 = sadd.s32 0, 0
    %p70 = scmp.eq.s32.totalorder 0, 0
    // Predicated region
    $region22: #{tpu_custom_call.1} parent=1 // pred_check
      %p71 = pneg %p70
    $region23: #{tpu_custom_call.1} parent=1 // pred_check_branch
      %73 = sbr.rel (%p71) target = $region25
    $region24: #{tpu_custom_call.1} parent=1 // pred_region
      %74 = vst [vmem:[#allocation2] sm:$0xff] 0.0
      %75 = vst [vmem:[#allocation2 + $0x8] sm:$0xff] 0.0
    $region25: #{tpu_custom_call.1} parent=1 // pred_fallthru
      _
    %v76 = vld [vmem:[%s66] sm:$0xff]
    %vm77 = vcmp.gt.f32.partialorder %v76, 1.0
    %v78 = vsel %vm77, 1, 0
    %v79 = vcvt.s32.f32 %v78
    %v80 = vld [vmem:[#allocation3] sm:$0xff]
    %v81 = vld [vmem:[#allocation3 + $0x8] sm:$0xff]
    %v82 = vld [vmem:[#allocation6] sm:$0xff]
    %v83 = vld [vmem:[#allocation6 + $0x8] sm:$0xff]
    %85 = vset.pattern.permute.xlu0 0
    %86 = vperm.xlu0 %85, %v79
    %v87 = vpop.permute.xlu0 %86
    %v89 = vmul.f32 %v82, %v87
    %v90 = vmul.f32 %v83, %v87
    %v91 = vsub.f32 %v80, %v89
    %v92 = vsub.f32 %v81, %v90
    %v93 = vmul.f32 %v91, %v91
    %v94 = vmul.f32 %v92, %v92
    %v95 = vld [vmem:[#allocation2] sm:$0xff]
    %v96 = vld [vmem:[#allocation2 + $0x8] sm:$0xff]
    %v97 = vadd.f32 %v93, 0.0
    %v98 = vadd.f32 %v94, 0.0
    %v99 = vadd.f32 %v95, %v97
    %v100 = vadd.f32 %v96, %v98
    %101 = vst [vmem:[#allocation2] sm:$0xff] %v99
    %102 = vst [vmem:[#allocation2 + $0x8] sm:$0xff] %v100
    // Predicated region
    $region26: #{tpu_custom_call.1} parent=1 // pred_check
      %p103 = pneg %p70
    $region27: #{tpu_custom_call.1} parent=1 // pred_check_branch
      %105 = sbr.rel (%p103) target = $region29
    $region28: #{tpu_custom_call.1} parent=1 // pred_region
      %v106 = vld [vmem:[#allocation2] sm:$0xff]
      %v107 = vld [vmem:[#allocation2 + $0x8] sm:$0xff]
      %108 = vst [vmem:[#allocation8] sm:$0xff] %v106
      %109 = vst [vmem:[#allocation8 + $0x8] sm:$0xff] %v107
    $region29: #{tpu_custom_call.1} parent=1 // pred_fallthru
      _
    // Predicated region
    $region30: #{tpu_custom_call.1} parent=1 // pred_check
      _
    $region31: #{tpu_custom_call.1} parent=1 // pred_check_branch
      %111 = sbr.rel (0) target = $region33
    $region32: #{tpu_custom_call.1} parent=1 // pred_region
      %113 = vsyncadd [#allocation5], 0
      %s115 = sshll.u32 [#allocation8], 4
      %s116 = int_to_ptr.vmem [resolvable:$true] %s115
      %s117 = sshll.u32 %s3, 4
      %s118 = int_to_ptr.hbm [resolvable:$true] %s117
      %120 = dma.vmem_to_hbm [thread:$0]  %s116, 256, %s118, [#allocation5]
    $region33: #{tpu_custom_call.1} parent=1 // pred_fallthru
      _
    // Predicated region
    $region34: #{tpu_custom_call.1} parent=1 // pred_check
      _
    $region35: #{tpu_custom_call.1} parent=1 // pred_check_branch
      %122 = sbr.rel (0) target = $region37
    $region36: #{tpu_custom_call.1} parent=1 // pred_region
      %124 = dma.done [#allocation5], 256
    $region37: #{tpu_custom_call.1} parent=1 // pred_fallthru
      _
    %125 = vsyncpa [#allocation4], 1
    %126 = vsyncpa [#allocation7], 1
    %127 = vsyncpa [#allocation5], 1

</llo_original>
